<compile_context>
chip_gen: v7x
topology: tpu7x:2x2x1
jax: 0.10.0
libtpu: 0.0.40
codegen_flags: <defaults>
</compile_context>

<pallas_src>
import math

import jax
import jax.numpy as jnp
from jax.experimental import pallas as pl
from jax.experimental.pallas import tpu as pltpu

LOG_SIG_MIN = -20.0
LOG_SIG_MAX = 2.0  # module kwarg 'LOG_SIG_MAX'; default used here


def _round_up(x, m):
    return ((x + m - 1) // m) * m


def _make_policy_kernel(n_hidden, num_actions, log_sig_max, activation, compute_dtype):
    if activation == "relu":
        act = lambda v: jnp.maximum(v, 0.0)
    elif activation == "leaky_relu":
        act = lambda v: jnp.where(v >= 0.0, v, 0.01 * v)
    else:
        raise NotImplementedError(activation)

    def kernel(x_ref, *refs):
        mean_ref, log_std_ref = refs[-2], refs[-1]
        w1_ref, b1_ref = refs[0], refs[1]

        # linear1 + activation; activations are (feat, tile_b) -> lane-dense.
        h = jnp.dot(w1_ref[...], x_ref[...], preferred_element_type=jnp.float32)
        h = act(h + b1_ref[...])

        # hidden layers (num_layers - 1 of them), statically unrolled.
        idx = 2
        for _ in range(n_hidden):
            w_ref, b_ref = refs[idx], refs[idx + 1]
            idx += 2
            h = jnp.dot(w_ref[...], h.astype(compute_dtype),
                        preferred_element_type=jnp.float32)
            h = act(h + b_ref[...])

        # fused mean|log_std head: one MXU pass, result (2A, tile_b).
        wh_ref, bh_ref = refs[idx], refs[idx + 1]
        head = jnp.dot(wh_ref[...], h.astype(compute_dtype),
                       preferred_element_type=jnp.float32)
        head = head + bh_ref[...]

        # split along sublanes; scalar clamp only on the log_std half.
        mean_ref[...] = head[:num_actions].astype(mean_ref.dtype)
        log_std_ref[...] = jnp.clip(
            head[num_actions:], LOG_SIG_MIN, log_sig_max
        ).astype(log_std_ref.dtype)

    return kernel


def gaussian_policy_forward(
    state,
    params,
    *,
    log_sig_max=LOG_SIG_MAX,
    activation="relu",
    tile_b=8192,
    io_dtype=jnp.float32,
):
    """GaussianPolicy.forward: returns (mean, clamped log_std), shape (B, A)."""
    B, num_inputs = state.shape
    H = params["w1"].shape[0]          # weights in PyTorch (out, in) layout
    A = params["w_mean"].shape[0]
    hidden = params.get("hidden", ())
    n_hidden = len(hidden)
    io_dtype = jnp.dtype(io_dtype)

    # --- one-time layout work in the wrapper (never in the kernel) ----------
    # batch-on-lanes: transpose state once; the dtype cast fuses into the same op.
    x_t = state.T.astype(io_dtype)                       # (num_inputs, B)

    # fuse the two heads along the output (sublane) dim; biases stay f32.
    w_head = jnp.concatenate(
        [params["w_mean"], params["w_log_std"]], axis=0).astype(io_dtype)   # (2A, H)
    b_head = jnp.concatenate(
        [params["b_mean"], params["b_log_std"]], axis=0).astype(jnp.float32)  # (2A, 1)

    weight_ops = [params["w1"].astype(io_dtype), params["b1"].astype(jnp.float32)]
    for wh, bh in hidden:
        weight_ops += [wh.astype(io_dtype), bh.astype(jnp.float32)]
    weight_ops += [w_head, b_head]

    # --- batch tiling --------------------------------------------------------
    # tile: multiple of 128 (lane rule), large enough to amortize per-step
    # overhead, capped near ceil(B/2) so the grid has >= 2 parallel steps
    # (v7x megacore) when the batch is big enough to split.
    tile = max(128, min(_round_up(tile_b, 128), _round_up(pl.cdiv(B, 2), 128)))
    grid = (pl.cdiv(B, tile),)        # no jnp.pad of x: boundary blocks are masked

    in_specs = [pl.BlockSpec((num_inputs, tile), lambda i: (0, i))]
    for op in weight_ops:
        # full-array block, same index every step -> stays VMEM-resident
        in_specs.append(pl.BlockSpec(op.shape, lambda i: (0, 0)))
    out_specs = (
        pl.BlockSpec((A, tile), lambda i: (0, i)),   # mean  (lane-dense store)
        pl.BlockSpec((A, tile), lambda i: (0, i)),   # log_std
    )

    flops = 2 * B * (num_inputs * H + n_hidden * H * H + H * 2 * A)
    bytes_accessed = int(
        x_t.size * x_t.dtype.itemsize
        + sum(int(op.size) * op.dtype.itemsize for op in weight_ops)
        + 2 * A * B * 4
    )

    # VMEM footprint estimate: only raise the scoped limit when needed
    # (v5e default is 16 MiB; keep headroom, cap at v7x's 64 MiB physical).
    est_vmem = (
        2 * num_inputs * tile * io_dtype.itemsize          # double-buffered input
        + 2 * 2 * A * tile * 4                             # double-buffered outputs
        + 4 * H * tile * 4                                 # live f32 intermediates
        + sum(int(op.size) * op.dtype.itemsize for op in weight_ops)
    )
    vmem_limit = None
    if est_vmem > 14 * 1024 * 1024:
        vmem_limit = int(min(2 * est_vmem, 64 * 1024 * 1024))

    kernel = _make_policy_kernel(n_hidden, A, float(log_sig_max), activation, io_dtype)

    mean_t, log_std_t = pl.pallas_call(
        kernel,
        out_shape=(
            jax.ShapeDtypeStruct((A, B), jnp.float32),
            jax.ShapeDtypeStruct((A, B), jnp.float32),
        ),
        grid=grid,
        in_specs=in_specs,
        out_specs=out_specs,
        compiler_params=pltpu.CompilerParams(
            dimension_semantics=("parallel",),
            vmem_limit_bytes=vmem_limit,
        ),
        cost_estimate=pl.CostEstimate(
            flops=flops, transcendentals=0, bytes_accessed=bytes_accessed
        ),
    )(x_t, *weight_ops)

    # back to batch-first for the caller (tiny (A, B) -> (B, A) transposes).
    return mean_t.T, log_std_t.T


# ----------------------------- init & reference --------------------------------
def xavier_uniform(key, fan_in, fan_out, gain=1.0, dtype=jnp.float32):
    """torch.nn.init.xavier_uniform_, returned in PyTorch Linear (out, in) layout."""
    bound = gain * math.sqrt(6.0 / (fan_in + fan_out))
    return jax.random.uniform(
        key, (fan_out, fan_in), dtype=dtype, minval=-bound, maxval=bound
    )


def init_params(key, num_inputs, hidden_dim, num_actions, num_layers=2):
    n_hidden = num_layers - 1
    keys = jax.random.split(key, 3 + n_hidden)
    hidden = tuple(
        (xavier_uniform(keys[1 + i], hidden_dim, hidden_dim),
         jnp.zeros((hidden_dim, 1), jnp.float32))
        for i in range(n_hidden)
    )
    return {
        "w1": xavier_uniform(keys[0], num_inputs, hidden_dim),        # (H, in)
        "b1": jnp.zeros((hidden_dim, 1), jnp.float32),
        "hidden": hidden,
        # initialize_last_layer_zero / near_zero both False -> plain xavier
        "w_mean": xavier_uniform(keys[1 + n_hidden], hidden_dim, num_actions),    # (A, H)
        "b_mean": jnp.zeros((num_actions, 1), jnp.float32),
        "w_log_std": xavier_uniform(keys[2 + n_hidden], hidden_dim, num_actions),  # (A, H)
        "b_log_std": jnp.zeros((num_actions, 1), jnp.float32),
    }


def reference_forward(state, params, *, log_sig_max=LOG_SIG_MAX, activation="relu"):
    """Pure-JAX reference mirroring the PyTorch module (weights in (out, in))."""
    if activation == "relu":
        act = lambda v: jnp.maximum(v, 0.0)
    else:
        act = lambda v: jnp.where(v >= 0.0, v, 0.01 * v)
    h = act(state @ params["w1"].T + params["b1"][:, 0])
    for wh, bh in params.get("hidden", ()):
        h = act(h @ wh.T + bh[:, 0])
    mean = h @ params["w_mean"].T + params["b_mean"][:, 0]
    log_std = h @ params["w_log_std"].T + params["b_log_std"][:, 0]
    log_std = jnp.clip(log_std, LOG_SIG_MIN, log_sig_max)
    return mean, log_std


if __name__ == "__main__":
    # Shapes consistent with the module's forward:
    #   num_inputs=16, hidden_dim=32, num_actions=8, num_layers=2, batch=2
    B, num_inputs, hidden_dim, num_actions = 2, 16, 32, 8

    key = jax.random.PRNGKey(0)
    k_state, k_params, k_big = jax.random.split(key, 3)
    state = jax.random.normal(k_state, (B, num_inputs), dtype=jnp.float32)
    params = init_params(k_params, num_inputs, hidden_dim, num_actions, num_layers=2)

    # f32 path, tiny batch (single grid step, boundary-masked lanes).
    mean, log_std = gaussian_policy_forward(state, params)
    jax.block_until_ready((mean, log_std))
    ref_mean, ref_log_std = reference_forward(state, params)
    assert mean.shape == (B, num_actions) and log_std.shape == (B, num_actions)
    assert jnp.allclose(mean, ref_mean, atol=1e-5, rtol=1e-5)
    assert jnp.allclose(log_std, ref_log_std, atol=1e-5, rtol=1e-5)

    # Non-divisible batch: exercises cdiv grid, multi-step pipeline, masked tail.
    B2 = 300
    state2 = jax.random.normal(k_big, (B2, num_inputs), dtype=jnp.float32)
    mean2, log_std2 = gaussian_policy_forward(state2, params, tile_b=128)
    jax.block_until_ready((mean2, log_std2))
    ref_mean2, ref_log_std2 = reference_forward(state2, params)
    assert mean2.shape == (B2, num_actions) and log_std2.shape == (B2, num_actions)
    assert jnp.allclose(mean2, ref_mean2, atol=1e-5, rtol=1e-5)
    assert jnp.allclose(log_std2, ref_log_std2, atol=1e-5, rtol=1e-5)

    # bf16 I/O path (f32 accumulation inside the kernel) — looser tolerance.
    mean3, log_std3 = gaussian_policy_forward(state2, params, io_dtype=jnp.bfloat16)
    jax.block_until_ready((mean3, log_std3))
    assert jnp.allclose(mean3, ref_mean2, atol=5e-2, rtol=5e-2)
    assert jnp.allclose(log_std3, ref_log_std2, atol=5e-2, rtol=5e-2)

    print("KERNEL_OK")
</pallas_src>

<mosaic_0001>
module attributes {stable_mosaic.version = 11 : i64} {
  func.func @kernel(%arg0: i32, %arg1: memref<16x128xf32, #tpu.memory_space<vmem>>, %arg2: memref<32x16xf32, #tpu.memory_space<vmem>>, %arg3: memref<32x1xf32, #tpu.memory_space<vmem>>, %arg4: memref<32x32xf32, #tpu.memory_space<vmem>>, %arg5: memref<32x1xf32, #tpu.memory_space<vmem>>, %arg6: memref<16x32xf32, #tpu.memory_space<vmem>>, %arg7: memref<16x1xf32, #tpu.memory_space<vmem>>, %arg8: memref<8x128xf32, #tpu.memory_space<vmem>>, %arg9: memref<8x128xf32, #tpu.memory_space<vmem>>) attributes {dimension_semantics = [#tpu.dimension_semantics<parallel>], iteration_bounds = array<i64: 1>, scalar_prefetch = 0 : i64, scratch_operands = 0 : i64, tpu.core_type = #tpu.core_type<tc>, window_params = [{transform_indices = @transform_0, window_bounds = array<i64: 16, 128>}, {pipeline_mode = #tpu.pipeline_mode<synchronous>, transform_indices = @transform_1, window_bounds = array<i64: 32, 16>}, {pipeline_mode = #tpu.pipeline_mode<synchronous>, transform_indices = @transform_2, window_bounds = array<i64: 32, 1>}, {pipeline_mode = #tpu.pipeline_mode<synchronous>, transform_indices = @transform_3, window_bounds = array<i64: 32, 32>}, {pipeline_mode = #tpu.pipeline_mode<synchronous>, transform_indices = @transform_4, window_bounds = array<i64: 32, 1>}, {pipeline_mode = #tpu.pipeline_mode<synchronous>, transform_indices = @transform_5, window_bounds = array<i64: 16, 32>}, {pipeline_mode = #tpu.pipeline_mode<synchronous>, transform_indices = @transform_6, window_bounds = array<i64: 16, 1>}, {transform_indices = @transform_7, window_bounds = array<i64: 8, 128>}, {transform_indices = @transform_8, window_bounds = array<i64: 8, 128>}]} {
    %c0 = arith.constant 0 : index
    %c0_0 = arith.constant 0 : index
    %0 = vector.load %arg2[%c0, %c0_0] : memref<32x16xf32, #tpu.memory_space<vmem>>, vector<32x16xf32>
    %c0_1 = arith.constant 0 : index
    %c0_2 = arith.constant 0 : index
    %1 = vector.load %arg1[%c0_1, %c0_2] : memref<16x128xf32, #tpu.memory_space<vmem>>, vector<16x128xf32>
    %cst = arith.constant dense<0.000000e+00> : vector<32x128xf32>
    %2 = tpu.matmul %0, %1, %cst {dimension_numbers = #tpu.dot_dimension_numbers<[1], [0], [0], [1], [0, 0, 1, 1], [], []>} : vector<32x16xf32>, vector<16x128xf32>, vector<32x128xf32> -> vector<32x128xf32>
    %c0_3 = arith.constant 0 : index
    %c0_4 = arith.constant 0 : index
    %3 = vector.load %arg3[%c0_3, %c0_4] : memref<32x1xf32, #tpu.memory_space<vmem>>, vector<32x1xf32>
    %4 = vector.broadcast %3 : vector<32x1xf32> to vector<32x128xf32>
    %5 = arith.addf %2, %4 : vector<32x128xf32>
    %cst_5 = arith.constant 0.000000e+00 : f32
    %6 = vector.broadcast %cst_5 : f32 to vector<32x128xf32>
    %7 = arith.maximumf %5, %6 : vector<32x128xf32>
    %c0_6 = arith.constant 0 : index
    %c0_7 = arith.constant 0 : index
    %8 = vector.load %arg4[%c0_6, %c0_7] : memref<32x32xf32, #tpu.memory_space<vmem>>, vector<32x32xf32>
    %cst_8 = arith.constant dense<0.000000e+00> : vector<32x128xf32>
    %9 = tpu.matmul %8, %7, %cst_8 {dimension_numbers = #tpu.dot_dimension_numbers<[1], [0], [0], [1], [0, 0, 1, 1], [], []>} : vector<32x32xf32>, vector<32x128xf32>, vector<32x128xf32> -> vector<32x128xf32>
    %c0_9 = arith.constant 0 : index
    %c0_10 = arith.constant 0 : index
    %10 = vector.load %arg5[%c0_9, %c0_10] : memref<32x1xf32, #tpu.memory_space<vmem>>, vector<32x1xf32>
    %11 = vector.broadcast %10 : vector<32x1xf32> to vector<32x128xf32>
    %12 = arith.addf %9, %11 : vector<32x128xf32>
    %cst_11 = arith.constant 0.000000e+00 : f32
    %13 = vector.broadcast %cst_11 : f32 to vector<32x128xf32>
    %14 = arith.maximumf %12, %13 : vector<32x128xf32>
    %c0_12 = arith.constant 0 : index
    %c0_13 = arith.constant 0 : index
    %15 = vector.load %arg6[%c0_12, %c0_13] : memref<16x32xf32, #tpu.memory_space<vmem>>, vector<16x32xf32>
    %cst_14 = arith.constant dense<0.000000e+00> : vector<16x128xf32>
    %16 = tpu.matmul %15, %14, %cst_14 {dimension_numbers = #tpu.dot_dimension_numbers<[1], [0], [0], [1], [0, 0, 1, 1], [], []>} : vector<16x32xf32>, vector<32x128xf32>, vector<16x128xf32> -> vector<16x128xf32>
    %c0_15 = arith.constant 0 : index
    %c0_16 = arith.constant 0 : index
    %17 = vector.load %arg7[%c0_15, %c0_16] : memref<16x1xf32, #tpu.memory_space<vmem>>, vector<16x1xf32>
    %18 = vector.broadcast %17 : vector<16x1xf32> to vector<16x128xf32>
    %19 = arith.addf %16, %18 : vector<16x128xf32>
    %20 = vector.extract_strided_slice %19 {offsets = [0, 0], sizes = [8, 128], strides = [1, 1]} : vector<16x128xf32> to vector<8x128xf32>
    %c0_17 = arith.constant 0 : index
    %c0_18 = arith.constant 0 : index
    %21 = vector.load %arg8[%c0_17, %c0_18] : memref<8x128xf32, #tpu.memory_space<vmem>>, vector<8x128xf32>
    tpu.vector_store %arg8[%c0_17, %c0_18], %20 {strides = array<i32>} : memref<8x128xf32, #tpu.memory_space<vmem>>, vector<8x128xf32>,
    %22 = vector.extract_strided_slice %19 {offsets = [8, 0], sizes = [8, 128], strides = [1, 1]} : vector<16x128xf32> to vector<8x128xf32>
    %cst_19 = arith.constant -2.000000e+01 : f32
    %cst_20 = arith.constant 2.000000e+00 : f32
    %23 = vector.broadcast %cst_19 : f32 to vector<8x128xf32>
    %24 = arith.maximumf %23, %22 : vector<8x128xf32>
    %25 = vector.broadcast %cst_20 : f32 to vector<8x128xf32>
    %26 = arith.minimumf %25, %24 : vector<8x128xf32>
    %c0_21 = arith.constant 0 : index
    %c0_22 = arith.constant 0 : index
    %27 = vector.load %arg9[%c0_21, %c0_22] : memref<8x128xf32, #tpu.memory_space<vmem>>, vector<8x128xf32>
    tpu.vector_store %arg9[%c0_21, %c0_22], %26 {strides = array<i32>} : memref<8x128xf32, #tpu.memory_space<vmem>>, vector<8x128xf32>,
    return
  }
  func.func @transform_0(%arg0: i32) -> (i32, i32) {
    %c0_i32 = arith.constant 0 : i32
    %c0_i32_0 = arith.constant 0 : i32
    return %c0_i32, %arg0 : i32, i32
  }
  func.func @transform_1(%arg0: i32) -> (i32, i32) {
    %c0_i32 = arith.constant 0 : i32
    %c0_i32_0 = arith.constant 0 : i32
    %c0_i32_1 = arith.constant 0 : i32
    return %c0_i32, %c0_i32_0 : i32, i32
  }
  func.func @transform_2(%arg0: i32) -> (i32, i32) {
    %c0_i32 = arith.constant 0 : i32
    %c0_i32_0 = arith.constant 0 : i32
    %c0_i32_1 = arith.constant 0 : i32
    return %c0_i32, %c0_i32_0 : i32, i32
  }
  func.func @transform_3(%arg0: i32) -> (i32, i32) {
    %c0_i32 = arith.constant 0 : i32
    %c0_i32_0 = arith.constant 0 : i32
    %c0_i32_1 = arith.constant 0 : i32
    return %c0_i32, %c0_i32_0 : i32, i32
  }
  func.func @transform_4(%arg0: i32) -> (i32, i32) {
    %c0_i32 = arith.constant 0 : i32
    %c0_i32_0 = arith.constant 0 : i32
    %c0_i32_1 = arith.constant 0 : i32
    return %c0_i32, %c0_i32_0 : i32, i32
  }
  func.func @transform_5(%arg0: i32) -> (i32, i32) {
    %c0_i32 = arith.constant 0 : i32
    %c0_i32_0 = arith.constant 0 : i32
    %c0_i32_1 = arith.constant 0 : i32
    return %c0_i32, %c0_i32_0 : i32, i32
  }
  func.func @transform_6(%arg0: i32) -> (i32, i32) {
    %c0_i32 = arith.constant 0 : i32
    %c0_i32_0 = arith.constant 0 : i32
    %c0_i32_1 = arith.constant 0 : i32
    return %c0_i32, %c0_i32_0 : i32, i32
  }
  func.func @transform_7(%arg0: i32) -> (i32, i32) {
    %c0_i32 = arith.constant 0 : i32
    %c0_i32_0 = arith.constant 0 : i32
    return %c0_i32, %arg0 : i32, i32
  }
  func.func @transform_8(%arg0: i32) -> (i32, i32) {
    %c0_i32 = arith.constant 0 : i32
    %c0_i32_0 = arith.constant 0 : i32
    return %c0_i32, %arg0 : i32, i32
  }
}

</mosaic_0001>

<llo_original>
// kernel: tpu_custom_call.1
$region0: #{tpu_custom_call.1}
  #allocation0 [shape = 'u32[]', space=smem, size = 0x4, offset = 0x4, fixed_abs, tag = 'smem constant byte address 0x4 - core index']
  #allocation1 [shape = 'u32[144,128]{1,0:T(1,128)}', space=vmem, size = 0x12000, scoped, tag = 'internal scratch']
  %s0 = inlined_call_operand.vmem [shape: f32[16,2], index: 0, kind: input, shape index: {}]
  %s1 = inlined_call_operand.vmem [shape: f32[32,16], index: 1, kind: input, shape index: {}]
  %s2 = inlined_call_operand.vmem [shape: f32[32,1], index: 2, kind: input, shape index: {}]
  %s3 = inlined_call_operand.vmem [shape: f32[32,32], index: 3, kind: input, shape index: {}]
  %s4 = inlined_call_operand.vmem [shape: f32[32,1], index: 4, kind: input, shape index: {}]
  %s5 = inlined_call_operand.vmem [shape: f32[16,32], index: 5, kind: input, shape index: {}]
  %s6 = inlined_call_operand.vmem [shape: f32[16,1], index: 6, kind: input, shape index: {}]
  %s7 = inlined_call_operand.vmem [shape: f32[8,2], index: 7, kind: output, shape index: {0}]
  %s8 = inlined_call_operand.vmem [shape: f32[8,2], index: 8, kind: output, shape index: {1}]
  %9 = xla_tuple %s7, %s8
  %s10 = sld [smem:[#allocation0]]
  $region46: #{tpu_custom_call.1} parent=0
    _
  %s12 = ssub.s32 1, %s10
  %s13 = scalar_select 0, %s12, %s10
  // Predicated region
  $region2: #{tpu_custom_call.1} parent=0 // pred_check
    _
  $region3: #{tpu_custom_call.1} parent=0 // pred_check_branch
    %15 = sbr.rel (0) target = $region5
  $region4: #{tpu_custom_call.1} parent=0 // pred_region
    _
  $region5: #{tpu_custom_call.1} parent=0 // pred_fallthru
    _
  // Predicated region
  $region6: #{tpu_custom_call.1} parent=0 // pred_check
    _
  $region7: #{tpu_custom_call.1} parent=0 // pred_check_branch
    %17 = sbr.rel (0) target = $region9
  $region8: #{tpu_custom_call.1} parent=0 // pred_region
    _
  $region9: #{tpu_custom_call.1} parent=0 // pred_fallthru
    _
  // Predicated region
  $region10: #{tpu_custom_call.1} parent=0 // pred_check
    _
  $region11: #{tpu_custom_call.1} parent=0 // pred_check_branch
    %19 = sbr.rel (0) target = $region13
  $region12: #{tpu_custom_call.1} parent=0 // pred_region
    _
  $region13: #{tpu_custom_call.1} parent=0 // pred_fallthru
    _
  // Predicated region
  $region14: #{tpu_custom_call.1} parent=0 // pred_check
    _
  $region15: #{tpu_custom_call.1} parent=0 // pred_check_branch
    %21 = sbr.rel (0) target = $region17
  $region16: #{tpu_custom_call.1} parent=0 // pred_region
    _
  $region17: #{tpu_custom_call.1} parent=0 // pred_fallthru
    _
  // Predicated region
  $region18: #{tpu_custom_call.1} parent=0 // pred_check
    _
  $region19: #{tpu_custom_call.1} parent=0 // pred_check_branch
    %23 = sbr.rel (0) target = $region21
  $region20: #{tpu_custom_call.1} parent=0 // pred_region
    _
  $region21: #{tpu_custom_call.1} parent=0 // pred_fallthru
    _
  // Predicated region
  $region22: #{tpu_custom_call.1} parent=0 // pred_check
    _
  $region23: #{tpu_custom_call.1} parent=0 // pred_check_branch
    %25 = sbr.rel (0) target = $region25
  $region24: #{tpu_custom_call.1} parent=0 // pred_region
    _
  $region25: #{tpu_custom_call.1} parent=0 // pred_fallthru
    _
  // Predicated region
  $region26: #{tpu_custom_call.1} parent=0 // pred_check
    _
  $region27: #{tpu_custom_call.1} parent=0 // pred_check_branch
    %27 = sbr.rel (0) target = $region29
  $region28: #{tpu_custom_call.1} parent=0 // pred_region
    _
  $region29: #{tpu_custom_call.1} parent=0 // pred_fallthru
    _
  %v28 = vld [vmem:[%s1] sm:$0xff]
  %v29 = vld [vmem:[%s1 + $0x8] sm:$0xff]
  %v30 = vld [vmem:[%s1 + $0x10] sm:$0xff]
  %v31 = vld [vmem:[%s1 + $0x18] sm:$0xff]
  %v32 = vld [vmem:[%s0] sm:$0xff]
  %v33 = vld [vmem:[%s0 + $0x8] sm:$0xff]
  %v34 = vld [vmem:[%s2] sm:$0xff]
  %v35 = vld [vmem:[%s2 + $0x8] sm:$0xff]
  %v36 = vld [vmem:[%s2 + $0x10] sm:$0xff]
  %v37 = vld [vmem:[%s2 + $0x18] sm:$0xff]
  %39 = vset.pattern.permute.xlu0 0
  %40 = vperm.xlu0 %39, %v34
  %v41 = vpop.permute.xlu0 %40
  %44 = vset.pattern.permute.xlu0 0
  %45 = vperm.xlu0 %44, %v35
  %v46 = vpop.permute.xlu0 %45
  %49 = vset.pattern.permute.xlu0 0
  %50 = vperm.xlu0 %49, %v36
  %v51 = vpop.permute.xlu0 %50
  %54 = vset.pattern.permute.xlu0 0
  %55 = vperm.xlu0 %54, %v37
  %v56 = vpop.permute.xlu0 %55
  %vm58 = vcmask 130048
  %v60 = vsel %vm58, %v28, 0
  %v63 = vsel %vm58, %v29, 0
  %v66 = vsel %vm58, %v30, 0
  %v69 = vsel %vm58, %v31, 0
  %71 = vmatprep.subr.mxu0 0.0
  %72 = vmatpush1.msra.mxu0 %v32
  %73 = vmatprep.subr.mxu0 0.0
  %74 = vmatpush1.msra.mxu0 %v33
  %75 = vmatprep.subr.mxu0 0.0
  %76 = vmatpush1.msra.mxu0 0.0
  %77 = vmatprep.subr.mxu0 0.0
  %78 = vmatpush1.msra.mxu0 0.0
  %79 = vmatprep.subr.mxu0 0.0
  %80 = vmatpush1.msra.mxu0 0.0
  %81 = vmatprep.subr.mxu0 0.0
  %82 = vmatpush1.msra.mxu0 0.0
  %83 = vmatprep.subr.mxu0 0.0
  %84 = vmatpush1.msra.mxu0 0.0
  %85 = vmatprep.subr.mxu0 0.0
  %86 = vmatpush1.msra.mxu0 0.0
  %87 = vmatprep.subr.mxu0 0.0
  %88 = vmatpush1.msra.mxu0 0.0
  %89 = vmatprep.subr.mxu0 0.0
  %90 = vmatpush1.msra.mxu0 0.0
  %91 = vmatprep.subr.mxu0 0.0
  %92 = vmatpush1.msra.mxu0 0.0
  %93 = vmatprep.subr.mxu0 0.0
  %94 = vmatpush1.msra.mxu0 0.0
  %95 = vmatprep.subr.mxu0 0.0
  %96 = vmatpush1.msra.mxu0 0.0
  %97 = vmatprep.subr.mxu0 0.0
  %98 = vmatpush1.msra.mxu0 0.0
  %99 = vmatprep.subr.mxu0 0.0
  %100 = vmatpush1.msra.mxu0 0.0
  %101 = vmatprep.subr.mxu0 0.0
  %102 = vmatpush1.msra.mxu0 0.0
  %103 = vmatprep.subr.mxu0 0.0
  %104 = vmatpush1.msra.mxu0 0.0
  %105 = vmatprep.subr.mxu0 0.0
  %106 = vmatpush1.msra.mxu0 0.0
  %107 = vmatprep.subr.mxu0 0.0
  %108 = vmatpush1.msra.mxu0 0.0
  %109 = vmatprep.subr.mxu0 0.0
  %110 = vmatpush1.msra.mxu0 0.0
  %111 = vmatprep.subr.mxu0 0.0
  %112 = vmatpush1.msra.mxu0 0.0
  %113 = vmatprep.subr.mxu0 0.0
  %114 = vmatpush1.msra.mxu0 0.0
  %115 = vmatprep.subr.mxu0 0.0
  %116 = vmatpush1.msra.mxu0 0.0
  %117 = vmatprep.subr.mxu0 0.0
  %118 = vmatpush1.msra.mxu0 0.0
  %119 = vmatprep.subr.mxu0 0.0
  %120 = vmatpush1.msra.mxu0 0.0
  %121 = vmatprep.subr.mxu0 0.0
  %122 = vmatpush1.msra.mxu0 0.0
  %123 = vmatprep.subr.mxu0 0.0
  %124 = vmatpush1.msra.mxu0 0.0
  %125 = vmatprep.subr.mxu0 0.0
  %126 = vmatpush1.msra.mxu0 0.0
  %127 = vmatprep.subr.mxu0 0.0
  %128 = vmatpush1.msra.mxu0 0.0
  %129 = vmatprep.subr.mxu0 0.0
  %130 = vmatpush1.msra.mxu0 0.0
  %131 = vmatprep.subr.mxu0 0.0
  %132 = vmatpush1.msra.mxu0 0.0
  %133 = vmatprep.subr.mxu0 0.0
  %134 = vmatpush1.msra.mxu0 0.0
  %135 = vmatprep.mubr.f32.mxu0 0.0
  %136 = vmatmul.mubr.f32.gmra.mrb[0].mxu0 %v60
  %v137 = vpop.f32.mrb[0].mxu0
  %v138 = vadd.f32 %v41, %v137
  %v139 = vpop.f32.mrb[0].mxu0
  %140 = vmatprep.mubr.f32.mxu0 0.0
  %141 = vmatmul.mubr.f32.gmra.mrb[0].mxu0 %v63
  %v142 = vpop.f32.mrb[0].mxu0
  %v143 = vadd.f32 %v46, %v142
  %v144 = vpop.f32.mrb[0].mxu0
  %145 = vmatprep.mubr.f32.mxu0 0.0
  %146 = vmatmul.mubr.f32.gmra.mrb[0].mxu0 %v66
  %v147 = vpop.f32.mrb[0].mxu0
  %v148 = vadd.f32 %v51, %v147
  %v149 = vpop.f32.mrb[0].mxu0
  %150 = vmatprep.mubr.f32.mxu0 0.0
  %151 = vmatmul.mubr.f32.gmra.mrb[0].mxu0 %v69
  %v152 = vpop.f32.mrb[0].mxu0
  %v153 = vadd.f32 %v56, %v152
  %v154 = vpop.f32.mrb[0].mxu0
  %155 = vdwg.mxu0
  %v156 = vmax.f32 %v138, 0.0
  %v157 = vmax.f32 %v143, 0.0
  %v158 = vmax.f32 %v148, 0.0
  %v159 = vmax.f32 %v153, 0.0
  %v160 = vld [vmem:[%s3] sm:$0xff]
  %v161 = vld [vmem:[%s3 + $0x8] sm:$0xff]
  %v162 = vld [vmem:[%s3 + $0x10] sm:$0xff]
  %v163 = vld [vmem:[%s3 + $0x18] sm:$0xff]
  %v164 = vld [vmem:[%s4] sm:$0xff]
  %v165 = vld [vmem:[%s4 + $0x8] sm:$0xff]
  %v166 = vld [vmem:[%s4 + $0x10] sm:$0xff]
  %v167 = vld [vmem:[%s4 + $0x18] sm:$0xff]
  %169 = vset.pattern.permute.xlu0 0
  %170 = vperm.xlu0 %169, %v164
  %v171 = vpop.permute.xlu0 %170
  %174 = vset.pattern.permute.xlu0 0
  %175 = vperm.xlu0 %174, %v165
  %v176 = vpop.permute.xlu0 %175
  %179 = vset.pattern.permute.xlu0 0
  %180 = vperm.xlu0 %179, %v166
  %v181 = vpop.permute.xlu0 %180
  %184 = vset.pattern.permute.xlu0 0
  %185 = vperm.xlu0 %184, %v167
  %v186 = vpop.permute.xlu0 %185
  %vm188 = vcmask 261120
  %v190 = vsel %vm188, %v160, 0
  %v193 = vsel %vm188, %v161, 0
  %v196 = vsel %vm188, %v162, 0
  %v199 = vsel %vm188, %v163, 0
  %201 = vmatprep.subr.mxu0 0.0
  %202 = vmatpush1.msra.mxu0 %v156
  %203 = vmatprep.subr.mxu0 0.0
  %204 = vmatpush1.msra.mxu0 %v157
  %205 = vmatprep.subr.mxu0 0.0
  %206 = vmatpush1.msra.mxu0 %v158
  %207 = vmatprep.subr.mxu0 0.0
  %208 = vmatpush1.msra.mxu0 %v159
  %209 = vmatprep.subr.mxu0 0.0
  %210 = vmatpush1.msra.mxu0 0.0
  %211 = vmatprep.subr.mxu0 0.0
  %212 = vmatpush1.msra.mxu0 0.0
  %213 = vmatprep.subr.mxu0 0.0
  %214 = vmatpush1.msra.mxu0 0.0
  %215 = vmatprep.subr.mxu0 0.0
  %216 = vmatpush1.msra.mxu0 0.0
  %217 = vmatprep.subr.mxu0 0.0
  %218 = vmatpush1.msra.mxu0 0.0
  %219 = vmatprep.subr.mxu0 0.0
  %220 = vmatpush1.msra.mxu0 0.0
  %221 = vmatprep.subr.mxu0 0.0
  %222 = vmatpush1.msra.mxu0 0.0
  %223 = vmatprep.subr.mxu0 0.0
  %224 = vmatpush1.msra.mxu0 0.0
  %225 = vmatprep.subr.mxu0 0.0
  %226 = vmatpush1.msra.mxu0 0.0
  %227 = vmatprep.subr.mxu0 0.0
  %228 = vmatpush1.msra.mxu0 0.0
  %229 = vmatprep.subr.mxu0 0.0
  %230 = vmatpush1.msra.mxu0 0.0
  %231 = vmatprep.subr.mxu0 0.0
  %232 = vmatpush1.msra.mxu0 0.0
  %233 = vmatprep.subr.mxu0 0.0
  %234 = vmatpush1.msra.mxu0 0.0
  %235 = vmatprep.subr.mxu0 0.0
  %236 = vmatpush1.msra.mxu0 0.0
  %237 = vmatprep.subr.mxu0 0.0
  %238 = vmatpush1.msra.mxu0 0.0
  %239 = vmatprep.subr.mxu0 0.0
  %240 = vmatpush1.msra.mxu0 0.0
  %241 = vmatprep.subr.mxu0 0.0
  %242 = vmatpush1.msra.mxu0 0.0
  %243 = vmatprep.subr.mxu0 0.0
  %244 = vmatpush1.msra.mxu0 0.0
  %245 = vmatprep.subr.mxu0 0.0
  %246 = vmatpush1.msra.mxu0 0.0
  %247 = vmatprep.subr.mxu0 0.0
  %248 = vmatpush1.msra.mxu0 0.0
  %249 = vmatprep.subr.mxu0 0.0
  %250 = vmatpush1.msra.mxu0 0.0
  %251 = vmatprep.subr.mxu0 0.0
  %252 = vmatpush1.msra.mxu0 0.0
  %253 = vmatprep.subr.mxu0 0.0
  %254 = vmatpush1.msra.mxu0 0.0
  %255 = vmatprep.subr.mxu0 0.0
  %256 = vmatpush1.msra.mxu0 0.0
  %257 = vmatprep.subr.mxu0 0.0
  %258 = vmatpush1.msra.mxu0 0.0
  %259 = vmatprep.subr.mxu0 0.0
  %260 = vmatpush1.msra.mxu0 0.0
  %261 = vmatprep.subr.mxu0 0.0
  %262 = vmatpush1.msra.mxu0 0.0
  %263 = vmatprep.subr.mxu0 0.0
  %264 = vmatpush1.msra.mxu0 0.0
  %265 = vmatprep.mubr.f32.mxu0 0.0
  %266 = vmatmul.mubr.f32.gmra.mrb[0].mxu0 %v190
  %v267 = vpop.f32.mrb[0].mxu0
  %v268 = vadd.f32 %v171, %v267
  %v269 = vpop.f32.mrb[0].mxu0
  %270 = vmatprep.mubr.f32.mxu0 0.0
  %271 = vmatmul.mubr.f32.gmra.mrb[0].mxu0 %v193
  %v272 = vpop.f32.mrb[0].mxu0
  %v273 = vadd.f32 %v176, %v272
  %v274 = vpop.f32.mrb[0].mxu0
  %275 = vmatprep.mubr.f32.mxu0 0.0
  %276 = vmatmul.mubr.f32.gmra.mrb[0].mxu0 %v196
  %v277 = vpop.f32.mrb[0].mxu0
  %v278 = vadd.f32 %v181, %v277
  %v279 = vpop.f32.mrb[0].mxu0
  %280 = vmatprep.mubr.f32.mxu0 0.0
  %281 = vmatmul.mubr.f32.gmra.mrb[0].mxu0 %v199
  %v282 = vpop.f32.mrb[0].mxu0
  %v283 = vadd.f32 %v186, %v282
  %v284 = vpop.f32.mrb[0].mxu0
  %285 = vdwg.mxu0
  %v286 = vmax.f32 %v268, 0.0
  %v287 = vmax.f32 %v273, 0.0
  %v288 = vmax.f32 %v278, 0.0
  %v289 = vmax.f32 %v283, 0.0
  %v290 = vld [vmem:[%s5] sm:$0xff]
  %v291 = vld [vmem:[%s5 + $0x8] sm:$0xff]
  %v292 = vld [vmem:[%s6] sm:$0xff]
  %v293 = vld [vmem:[%s6 + $0x8] sm:$0xff]
  %295 = vset.pattern.permute.xlu0 0
  %296 = vperm.xlu0 %295, %v292
  %v297 = vpop.permute.xlu0 %296
  %300 = vset.pattern.permute.xlu0 0
  %301 = vperm.xlu0 %300, %v293
  %v302 = vpop.permute.xlu0 %301
  %v305 = vsel %vm188, %v290, 0
  %v308 = vsel %vm188, %v291, 0
  %310 = vmatprep.subr.mxu0 0.0
  %311 = vmatpush1.msra.mxu0 %v286
  %312 = vmatprep.subr.mxu0 0.0
  %313 = vmatpush1.msra.mxu0 %v287
  %314 = vmatprep.subr.mxu0 0.0
  %315 = vmatpush1.msra.mxu0 %v288
  %316 = vmatprep.subr.mxu0 0.0
  %317 = vmatpush1.msra.mxu0 %v289
  %318 = vmatprep.subr.mxu0 0.0
  %319 = vmatpush1.msra.mxu0 0.0
  %320 = vmatprep.subr.mxu0 0.0
  %321 = vmatpush1.msra.mxu0 0.0
  %322 = vmatprep.subr.mxu0 0.0
  %323 = vmatpush1.msra.mxu0 0.0
  %324 = vmatprep.subr.mxu0 0.0
  %325 = vmatpush1.msra.mxu0 0.0
  %326 = vmatprep.subr.mxu0 0.0
  %327 = vmatpush1.msra.mxu0 0.0
  %328 = vmatprep.subr.mxu0 0.0
  %329 = vmatpush1.msra.mxu0 0.0
  %330 = vmatprep.subr.mxu0 0.0
  %331 = vmatpush1.msra.mxu0 0.0
  %332 = vmatprep.subr.mxu0 0.0
  %333 = vmatpush1.msra.mxu0 0.0
  %334 = vmatprep.subr.mxu0 0.0
  %335 = vmatpush1.msra.mxu0 0.0
  %336 = vmatprep.subr.mxu0 0.0
  %337 = vmatpush1.msra.mxu0 0.0
  %338 = vmatprep.subr.mxu0 0.0
  %339 = vmatpush1.msra.mxu0 0.0
  %340 = vmatprep.subr.mxu0 0.0
  %341 = vmatpush1.msra.mxu0 0.0
  %342 = vmatprep.subr.mxu0 0.0
  %343 = vmatpush1.msra.mxu0 0.0
  %344 = vmatprep.subr.mxu0 0.0
  %345 = vmatpush1.msra.mxu0 0.0
  %346 = vmatprep.subr.mxu0 0.0
  %347 = vmatpush1.msra.mxu0 0.0
  %348 = vmatprep.subr.mxu0 0.0
  %349 = vmatpush1.msra.mxu0 0.0
  %350 = vmatprep.subr.mxu0 0.0
  %351 = vmatpush1.msra.mxu0 0.0
  %352 = vmatprep.subr.mxu0 0.0
  %353 = vmatpush1.msra.mxu0 0.0
  %354 = vmatprep.subr.mxu0 0.0
  %355 = vmatpush1.msra.mxu0 0.0
  %356 = vmatprep.subr.mxu0 0.0
  %357 = vmatpush1.msra.mxu0 0.0
  %358 = vmatprep.subr.mxu0 0.0
  %359 = vmatpush1.msra.mxu0 0.0
  %360 = vmatprep.subr.mxu0 0.0
  %361 = vmatpush1.msra.mxu0 0.0
  %362 = vmatprep.subr.mxu0 0.0
  %363 = vmatpush1.msra.mxu0 0.0
  %364 = vmatprep.subr.mxu0 0.0
  %365 = vmatpush1.msra.mxu0 0.0
  %366 = vmatprep.subr.mxu0 0.0
  %367 = vmatpush1.msra.mxu0 0.0
  %368 = vmatprep.subr.mxu0 0.0
  %369 = vmatpush1.msra.mxu0 0.0
  %370 = vmatprep.subr.mxu0 0.0
  %371 = vmatpush1.msra.mxu0 0.0
  %372 = vmatprep.subr.mxu0 0.0
  %373 = vmatpush1.msra.mxu0 0.0
  %374 = vmatprep.mubr.f32.mxu0 0.0
  %375 = vmatmul.mubr.f32.gmra.mrb[0].mxu0 %v305
  %v376 = vpop.f32.mrb[0].mxu0
  %v377 = vadd.f32 %v297, %v376
  %v378 = vpop.f32.mrb[0].mxu0
  %379 = vmatprep.mubr.f32.mxu0 0.0
  %380 = vmatmul.mubr.f32.gmra.mrb[0].mxu0 %v308
  %v381 = vpop.f32.mrb[0].mxu0
  %v382 = vadd.f32 %v302, %v381
  %v383 = vpop.f32.mrb[0].mxu0
  %384 = vdwg.mxu0
  %385 = vst [vmem:[%s7] sm:$0xff] %v377
  %v386 = vmax.f32 %v382, -20.0
  %v387 = vmin.f32 %v386, 2.0
  %388 = vst [vmem:[%s8] sm:$0xff] %v387
  // Predicated region
  $region30: #{tpu_custom_call.1} parent=0 // pred_check
    _
  $region31: #{tpu_custom_call.1} parent=0 // pred_check_branch
    %390 = sbr.rel (0) target = $region33
  $region32: #{tpu_custom_call.1} parent=0 // pred_region
    _
  $region33: #{tpu_custom_call.1} parent=0 // pred_fallthru
    _
  // Predicated region
  $region34: #{tpu_custom_call.1} parent=0 // pred_check
    _
  $region35: #{tpu_custom_call.1} parent=0 // pred_check_branch
    %392 = sbr.rel (0) target = $region37
  $region36: #{tpu_custom_call.1} parent=0 // pred_region
    _
  $region37: #{tpu_custom_call.1} parent=0 // pred_fallthru
    _
  // Predicated region
  $region38: #{tpu_custom_call.1} parent=0 // pred_check
    _
  $region39: #{tpu_custom_call.1} parent=0 // pred_check_branch
    %394 = sbr.rel (0) target = $region41
  $region40: #{tpu_custom_call.1} parent=0 // pred_region
    _
  $region41: #{tpu_custom_call.1} parent=0 // pred_fallthru
    _
  // Predicated region
  $region42: #{tpu_custom_call.1} parent=0 // pred_check
    _
  $region43: #{tpu_custom_call.1} parent=0 // pred_check_branch
    %396 = sbr.rel (0) target = $region45
  $region44: #{tpu_custom_call.1} parent=0 // pred_region
    _
  $region45: #{tpu_custom_call.1} parent=0 // pred_fallthru
    _

</llo_original>
